<compile_context>
chip_gen: v6e
topology: v6e:2x2x1
jax: 0.10.0
libtpu: 0.0.40
codegen_flags: <defaults>
</compile_context>

<pallas_src>
import functools

import jax
import jax.numpy as jnp
from jax.experimental import pallas as pl
from jax.experimental.pallas import tpu as pltpu


def _round_up(x: int, m: int) -> int:
    return ((x + m - 1) // m) * m


def _choose_tile_rows(total_rows: int, bytes_per_row: int, itemsize: int) -> int:
    """Pick an output tile height (in rows of the stored slab)."""
    pack = {4: 8, 2: 16, 1: 32}.get(itemsize, 8)      # dtype-dependent sublane packing
    target_bytes = 6 * 1024 * 1024                    # ~6 MiB/block; 2x buffering < 16 MiB (v5e)
    tile = max(pack, (target_bytes // max(bytes_per_row, 1)) // pack * pack)
    if total_rows > 2 * pack:
        # Keep at least 2 grid steps so both v7x TensorCores get work.
        half = _round_up(-(-total_rows // 2), pack)
        tile = min(tile, half)
    if tile >= total_rows:
        return total_rows                             # single full block (any size allowed)
    return tile                                       # multiple of `pack` -> valid BlockSpec


def _pe_kernel(denom_ref, parity_ref, posoff_ref, out_ref, *, positions_per_row):
    """Fill one (TILE_ROWS, W) tile of the PE table (possibly lane-packed).

    Element (r, l) of the stored slab corresponds to
      position = (row0 + r) * positions_per_row + posoff[l]
      value    = sin(position / denom[l])  if parity[l] == 0
                 cos(position / denom[l])  otherwise
    which reproduces the reference float ops exactly.
    """
    L, W = out_ref.shape
    row0 = pl.program_id(0) * L
    r = jax.lax.broadcasted_iota(jnp.int32, (L, 1), dimension=0) + row0      # (L, 1)
    # Integer position (exact for positions < 2^24), then exact cast to f32.
    pos = (r * positions_per_row + posoff_ref[...]).astype(jnp.float32)      # (L, W)
    angle = pos / denom_ref[...]                                             # same div as ref
    pe = jnp.where(parity_ref[...] == 0, jnp.sin(angle), jnp.cos(angle))
    out_ref[...] = pe.astype(out_ref.dtype)


def positional_encoding(
    d_model: int, max_sequence_length: int, *, dtype=jnp.float32
) -> jax.Array:
    """Returns PE of shape (max_sequence_length, d_model)."""
    assert d_model % 2 == 0, "PositionalEncoding expects an even d_model"
    itemsize = jnp.dtype(dtype).itemsize

    # --- Reference-formulation per-pair denominator, computed once, outside the kernel.
    even_i = jnp.arange(0, d_model, 2, dtype=jnp.float32)
    denominator = jnp.power(10000.0, even_i / d_model)                       # (d_model/2,)

    # --- Choose the stored layout: lane-dense slab when d_model < 128.
    lane_pack = (
        d_model < 128
        and 128 % d_model == 0
        and (max_sequence_length * d_model) % 128 == 0
    )
    if lane_pack:
        W = 128
        positions_per_row = 128 // d_model
        rows = (max_sequence_length * d_model) // 128
        lane = jnp.arange(W, dtype=jnp.int32)
        feat = lane % d_model
        denom_row = denominator[feat // 2].reshape(1, W)
        parity_row = (feat % 2).astype(jnp.int32).reshape(1, W)
        posoff_row = (lane // d_model).astype(jnp.int32).reshape(1, W)
    else:
        W = d_model
        positions_per_row = 1
        rows = max_sequence_length
        col = jnp.arange(W, dtype=jnp.int32)
        denom_row = jnp.repeat(denominator, 2).reshape(1, W)                 # denom[c//2]
        parity_row = (col % 2).reshape(1, W)
        posoff_row = jnp.zeros((1, W), jnp.int32)

    tile_rows = _choose_tile_rows(rows, W * itemsize, itemsize)
    grid = (pl.cdiv(rows, tile_rows),)

    kernel = functools.partial(_pe_kernel, positions_per_row=positions_per_row)
    row_spec = pl.BlockSpec((1, W), lambda i: (0, 0))                        # tiny, reused rows

    out = pl.pallas_call(
        kernel,
        out_shape=jax.ShapeDtypeStruct((rows, W), dtype),
        grid=grid,
        in_specs=[row_spec, row_spec, row_spec],
        out_specs=pl.BlockSpec((tile_rows, W), lambda i: (i, 0)),
        compiler_params=pltpu.CompilerParams(
            dimension_semantics=("parallel",),  # shard sequence tiles across TCs on v7x
        ),
    )(denom_row, parity_row, posoff_row)

    if lane_pack:
        out = out.reshape(max_sequence_length, d_model)                      # row-major, free
    return out


def _reference_pe(d_model: int, max_sequence_length: int) -> jax.Array:
    """Pure-JAX reference replicating the PyTorch module exactly."""
    even_i = jnp.arange(0, d_model, 2, dtype=jnp.float32)
    denominator = jnp.power(10000.0, even_i / d_model)
    position = jnp.arange(max_sequence_length, dtype=jnp.float32).reshape(-1, 1)
    even_pe = jnp.sin(position / denominator)
    odd_pe = jnp.cos(position / denominator)
    stacked = jnp.stack([even_pe, odd_pe], axis=2)
    return stacked.reshape(max_sequence_length, d_model)


if __name__ == "__main__":
    _ = jax.random.PRNGKey(0)  # module has no tensor inputs; config is deterministic

    # Small config from the module spec (also exercises the lane-dense d_model<128 path).
    d_model, max_seq = 32, 16
    pe = jax.block_until_ready(positional_encoding(d_model, max_seq))
    ref = _reference_pe(d_model, max_seq)
    assert pe.shape == (max_seq, d_model)
    assert pe.dtype == jnp.float32
    assert jnp.allclose(pe, ref, atol=1e-5, rtol=1e-5)

    # Larger, multi-tile, non-multiple-of-tile shape (exercises the d_model>=128 path,
    # partial last block, and the grid row offset).
    d2, s2 = 128, 1000
    pe2 = jax.block_until_ready(positional_encoding(d2, s2))
    ref2 = _reference_pe(d2, s2)
    assert pe2.shape == (s2, d2)
    assert jnp.allclose(pe2, ref2, atol=1e-5, rtol=1e-5)

    print("KERNEL_OK")
</pallas_src>

<mosaic_0001>
module attributes {stable_mosaic.version = 11 : i64} {
  func.func @_pe_kernel(%arg0: i32, %arg1: memref<1x128xf32, #tpu.memory_space<vmem>>, %arg2: memref<1x128xi32, #tpu.memory_space<vmem>>, %arg3: memref<1x128xi32, #tpu.memory_space<vmem>>, %arg4: memref<4x128xf32, #tpu.memory_space<vmem>>) attributes {dimension_semantics = [#tpu.dimension_semantics<parallel>], iteration_bounds = array<i64: 1>, scalar_prefetch = 0 : i64, scratch_operands = 0 : i64, tpu.core_type = #tpu.core_type<tc>, window_params = [{pipeline_mode = #tpu.pipeline_mode<synchronous>, transform_indices = @transform_0, window_bounds = array<i64: 1, 128>}, {pipeline_mode = #tpu.pipeline_mode<synchronous>, transform_indices = @transform_1, window_bounds = array<i64: 1, 128>}, {pipeline_mode = #tpu.pipeline_mode<synchronous>, transform_indices = @transform_2, window_bounds = array<i64: 1, 128>}, {transform_indices = @transform_3, window_bounds = array<i64: 4, 128>}]} {
    %c4_i32 = arith.constant 4 : i32
    %0 = arith.muli %arg0, %c4_i32 : i32
    %1 = tpu.iota {dimensions = array<i32: 0>} : vector<4x1xi32>
    %2 = vector.broadcast %0 : i32 to vector<4x1xi32>
    %3 = arith.addi %1, %2 : vector<4x1xi32>
    %c4_i32_0 = arith.constant 4 : i32
    %4 = vector.broadcast %c4_i32_0 : i32 to vector<4x1xi32>
    %5 = arith.muli %3, %4 : vector<4x1xi32>
    %c0 = arith.constant 0 : index
    %c0_1 = arith.constant 0 : index
    %6 = vector.load %arg3[%c0, %c0_1] : memref<1x128xi32, #tpu.memory_space<vmem>>, vector<1x128xi32>
    %7 = vector.broadcast %5 : vector<4x1xi32> to vector<4x128xi32>
    %8 = vector.broadcast %6 : vector<1x128xi32> to vector<4x128xi32>
    %9 = arith.addi %7, %8 : vector<4x128xi32>
    %10 = arith.sitofp %9 : vector<4x128xi32> to vector<4x128xf32>
    %c0_2 = arith.constant 0 : index
    %c0_3 = arith.constant 0 : index
    %11 = vector.load %arg1[%c0_2, %c0_3] : memref<1x128xf32, #tpu.memory_space<vmem>>, vector<1x128xf32>
    %12 = vector.broadcast %11 : vector<1x128xf32> to vector<4x128xf32>
    %13 = arith.divf %10, %12 : vector<4x128xf32>
    %c0_4 = arith.constant 0 : index
    %c0_5 = arith.constant 0 : index
    %14 = vector.load %arg2[%c0_4, %c0_5] : memref<1x128xi32, #tpu.memory_space<vmem>>, vector<1x128xi32>
    %c0_i32 = arith.constant 0 : i32
    %15 = vector.broadcast %c0_i32 : i32 to vector<1x128xi32>
    %16 = arith.cmpi eq, %14, %15 : vector<1x128xi32>
    %17 = math.sin %13 : vector<4x128xf32>
    %18 = math.cos %13 : vector<4x128xf32>
    %19 = vector.shape_cast %16 : vector<1x128xi1> to vector<1x128xi1>
    %20 = vector.broadcast %19 : vector<1x128xi1> to vector<4x128xi1>
    %21 = arith.select %20, %17, %18 : vector<4x128xi1>, vector<4x128xf32>
    %c0_6 = arith.constant 0 : index
    %c0_7 = arith.constant 0 : index
    %22 = vector.load %arg4[%c0_6, %c0_7] : memref<4x128xf32, #tpu.memory_space<vmem>>, vector<4x128xf32>
    tpu.vector_store %arg4[%c0_6, %c0_7], %21 {strides = array<i32>} : memref<4x128xf32, #tpu.memory_space<vmem>>, vector<4x128xf32>,
    return
  }
  func.func @transform_0(%arg0: i32) -> (i32, i32) {
    %c0_i32 = arith.constant 0 : i32
    %c0_i32_0 = arith.constant 0 : i32
    %c0_i32_1 = arith.constant 0 : i32
    return %c0_i32, %c0_i32_0 : i32, i32
  }
  func.func @transform_1(%arg0: i32) -> (i32, i32) {
    %c0_i32 = arith.constant 0 : i32
    %c0_i32_0 = arith.constant 0 : i32
    %c0_i32_1 = arith.constant 0 : i32
    return %c0_i32, %c0_i32_0 : i32, i32
  }
  func.func @transform_2(%arg0: i32) -> (i32, i32) {
    %c0_i32 = arith.constant 0 : i32
    %c0_i32_0 = arith.constant 0 : i32
    %c0_i32_1 = arith.constant 0 : i32
    return %c0_i32, %c0_i32_0 : i32, i32
  }
  func.func @transform_3(%arg0: i32) -> (i32, i32) {
    %c0_i32 = arith.constant 0 : i32
    %c0_i32_0 = arith.constant 0 : i32
    return %arg0, %c0_i32 : i32, i32
  }
}

</mosaic_0001>

<llo_original>
// kernel: tpu_custom_call.1
$region0: #{tpu_custom_call.1}
  #allocation0 [shape = 'u32[]', space=smem, size = 0x4, offset = 0x4, fixed_abs, tag = 'smem constant byte address 0x4 - core index']
  #allocation1 [shape = 'u32[144,128]{1,0:T(1,128)}', space=vmem, size = 0x12000, scoped, tag = 'internal scratch']
  %s0 = inlined_call_operand.hbm [shape: f32[1,128], index: 0, kind: input, shape index: {}]
  %s1 = inlined_call_operand.vmem [shape: s32[1,128], index: 1, kind: input, shape index: {}]
  %s2 = inlined_call_operand.vmem [shape: s32[1,128], index: 2, kind: input, shape index: {}]
  %s3 = inlined_call_operand.hbm [shape: f32[4,128], index: 3, kind: output, shape index: {}]
  %s4 = sld [smem:[#allocation0]]
  $region26: #{tpu_custom_call.1} parent=0
    _
  %s6 = ssub.s32 1, %s4
  %s7 = scalar_select 0, %s6, %s4
  $region1: #{tpu_custom_call.1} parent=0
    #allocation2 [shape = 'u8[512]{0}', space=vmem, size = 0x400, scoped, tag = 'input window, operand 0, single buffered']
    #allocation3 [shape = 's32[1]{0}', space=sflag, size = 0x4, scoped, tag = 'scoped memory for tpu_custom_call.1']
    #allocation4 [shape = 's32[1]{0}', space=sflag, size = 0x4, scoped, tag = 'scoped memory for tpu_custom_call.1']
    #allocation5 [shape = 'u8[2048]{0}', space=vmem, size = 0x800, scoped, tag = 'output window, operand 0, single buffered']
    %8 = vsyncpa [#allocation3], 0
    %9 = vsyncpa [#allocation4], 0
    // Predicated region
    $region2: #{tpu_custom_call.1} parent=1 // pred_check
      _
    $region3: #{tpu_custom_call.1} parent=1 // pred_check_branch
      %11 = sbr.rel (0) target = $region5
    $region4: #{tpu_custom_call.1} parent=1 // pred_region
      %s13 = ssub.s32 16, 16
      %14 = vsyncadd [#allocation3], %s13
      %s16 = sshll.u32 [#allocation2], 4
      %s17 = int_to_ptr.vmem [resolvable:$true] %s16
      %19 = dma.hbm_to_vmem [thread:$0]  %s0, 16, %s17, [#allocation3]
    $region5: #{tpu_custom_call.1} parent=1 // pred_fallthru
      _
    // Predicated region
    $region6: #{tpu_custom_call.1} parent=1 // pred_check
      _
    $region7: #{tpu_custom_call.1} parent=1 // pred_check_branch
      %21 = sbr.rel (0) target = $region9
    $region8: #{tpu_custom_call.1} parent=1 // pred_region
      _
    $region9: #{tpu_custom_call.1} parent=1 // pred_fallthru
      _
    // Predicated region
    $region10: #{tpu_custom_call.1} parent=1 // pred_check
      _
    $region11: #{tpu_custom_call.1} parent=1 // pred_check_branch
      %23 = sbr.rel (0) target = $region13
    $region12: #{tpu_custom_call.1} parent=1 // pred_region
      _
    $region13: #{tpu_custom_call.1} parent=1 // pred_fallthru
      _
    // Predicated region
    $region14: #{tpu_custom_call.1} parent=1 // pred_check
      _
    $region15: #{tpu_custom_call.1} parent=1 // pred_check_branch
      %25 = sbr.rel (0) target = $region17
    $region16: #{tpu_custom_call.1} parent=1 // pred_region
      %26 = dma.done [#allocation3], 16
    $region17: #{tpu_custom_call.1} parent=1 // pred_fallthru
      _
    %s27 = smul.u32 0, 4
    %v28 = vlaneseq
    %v29 = vshrl.u32 %v28, 7
    %v30 = vstv %s27
    %v31 = vadd.s32 %v29, %v30
    %v32 = vmul.u32 %v31, 4
    %v33 = vld [vmem:[%s2] sm:$0x1]
    %v34 = vlaneseq
    %v35 = vshrl.u32 %v34, 7
    %v36 = vsub.s32 0, %v35
    %v37 = vrot.slane %v33, %v36
    %v38 = vadd.s32 %v32, %v37
    %v39 = vcvt.s32.f32 %v38
    %v40 = vld [vmem:[#allocation2] sm:$0x1]
    %v42 = vlaneseq
    %v43 = vshrl.u32 %v42, 7
    %v44 = vsub.s32 0, %v43
    %v45 = vrot.slane %v40, %v44
    %v47 = vrcp.pop %v45
    %v48 = vmul.f32 %v39, %v47
    %v49 = vld [vmem:[%s1] sm:$0x1]
    %vm50 = vcmp.eq.s32.totalorder %v49, 0
    %v51 = vand.u32 2147483647, %v48
    %vm52 = vcmp.le.f32.partialorder %v51, 0.7853982
    %vm53 = vcmp.lt.s32.totalorder %v48, 0
    %v54 = vand.u32 %v48, 2139095040
    %v55 = vshrl.u32 %v54, 23
    %v56 = vsub.s32 %v55, 127
    %v57 = vand.u32 2147483647, %v48
    %v58 = vand.u32 %v57, 8388607
    %v59 = vor.u32 %v58, 8388608
    %v60 = vsub.s32 0, %v59
    %v61 = vadd.s32 %v56, 1
    %vm62 = vcmp.gt.s32.totalorder %v61, 0
    %v63 = vsel %vm62, %v61, 0
    %v64 = vshrl.u32 %v63, 5
    %v65 = vand.u32 %v63, 31
    %v66 = vsub.s32 32, %v65
    %v67 = vshrl.u32 683565275, %v66
    %v68 = vshll.u32 683565275, %v65
    %v69 = vshrl.u32 2475754826, %v66
    %v70 = vor.u32 %v68, %v69
    %v71 = vshll.u32 2475754826, %v65
    %v72 = vshrl.u32 2131351028, %v66
    %v73 = vor.u32 %v71, %v72
    %v74 = vshll.u32 2131351028, %v65
    %v75 = vshrl.u32 2102212464, %v66
    %v76 = vor.u32 %v74, %v75
    %v77 = vshll.u32 2102212464, %v65
    %v78 = vshrl.u32 920167782, %v66
    %v79 = vor.u32 %v77, %v78
    %v80 = vshll.u32 920167782, %v65
    %v81 = vshrl.u32 1326507024, %v66
    %v82 = vor.u32 %v80, %v81
    %vm83 = vcmp.lt.s32.totalorder %v64, 1
    %vm84 = vcmp.lt.s32.totalorder %v64, 2
    %vm85 = vcmp.lt.s32.totalorder %v64, 3
    %vm86 = vcmp.lt.s32.totalorder %v64, 4
    %v87 = vsel %vm83, %v67, %v70
    %v88 = vsel %vm86, %v76, 2102212464
    %v89 = vsel %vm85, %v73, %v88
    %v90 = vsel %vm84, %v87, %v89
    %v91 = vsel %vm83, %v70, %v73
    %v92 = vsel %vm86, %v79, 920167782
    %v93 = vsel %vm85, %v76, %v92
    %v94 = vsel %vm84, %v91, %v93
    %v95 = vsel %vm83, %v73, %v76
    %v96 = vsel %vm86, %v82, 1326507024
    %v97 = vsel %vm85, %v79, %v96
    %v98 = vsel %vm84, %v95, %v97
    %v99 = vshll.u32 %v59, 8
    %v100 = vmul.u32.u64.compose %v99, %v98
    %v101 = vextract.low.u32 %v100
    %v102 = vextract.high.u32 %v100
    %v103 = vmul.u32.u64.compose %v99, %v94
    %v104 = vextract.low.u32 %v103
    %v105 = vextract.high.u32 %v103
    %v106 = vmul.u32 %v99, %v90
    %v107 = vadd.s32 %v102, %v104
    %vm108 = vc.u32 %v102, %v104
    %v109 = vadd.s32 %v105, 1
    %v110 = vsel %vm108, %v109, %v105
    %v111 = vadd.s32 %v106, %v110
    %v112 = vadd.s32 %v111, 536870912
    %v113 = vshrl.u32 %v112, 30
    %v114 = vshll.u32 %v113, 30
    %v115 = vsub.s32 %v111, %v114
    %vm116 = vcmp.lt.s32.totalorder %v115, 0
    %v117 = vsub.s32 0, %v115
    %v118 = vsel %vm116, %v117, %v115
    %v119 = vclz %v118
    %v120 = vsub.s32 %v119, 2
    %vm121 = vcmp.gt.s32.totalorder 0, %v120
    %v122 = vsel %vm121, 0, %v120
    %v123 = vsub.s32 32, %v122
    %v124 = vshll.u32 %v115, %v122
    %v125 = vshrl.u32 %v107, %v123
    %v126 = vor.u32 %v124, %v125
    %v127 = vsub.s32 4294967266, %v122
    %v128 = vadd.s32 %v127, 127
    %v129 = vshll.u32 %v128, 23
    %v130 = vor.u32 4788187, %v129
    %v131 = vand.u32 2147483647, %v130
    %v133 = vcvt.s32.f32 %v126
    %v134 = vmul.f32 %v133, %v131
    %v135 = vxor.u32 %v134, 2147483648
    %v136 = vsel %vm53, %v135, %v134
    %v137 = vsub.s32 4, %v113
    %v138 = vsel %vm53, %v137, %v113
    %v139 = vsel %vm52, %v48, %v136
    %v140 = vsel %vm52, 0, %v138
    %v141 = vcosq.f32.pop %v139
    %v142 = vsinq.f32.pop %v139
    %vm143 = vweird.f32 %v48
    %v144 = vadd.s32 %v140, 3
    %v145 = vand.u32 %v144, 3
    %vm146 = vcmp.lt.s32.totalorder %v145, 2
    %vm147 = vcmp.eq.s32.totalorder %v145, 0
    %v148 = vxor.u32 %v142, 2147483648
    %v149 = vsel %vm147, %v141, %v148
    %vm150 = vcmp.eq.s32.totalorder %v145, 2
    %v151 = vxor.u32 %v141, 2147483648
    %v152 = vsel %vm150, %v151, %v142
    %v153 = vsel %vm146, %v149, %v152
    %v154 = vsel %vm143, nan, %v153
    %v155 = vand.u32 2147483647, %v48
    %vm156 = vcmp.le.f32.partialorder %v155, 0.7853982
    %vm157 = vcmp.lt.s32.totalorder %v48, 0
    %v158 = vand.u32 %v48, 2139095040
    %v159 = vshrl.u32 %v158, 23
    %v160 = vsub.s32 %v159, 127
    %v161 = vand.u32 2147483647, %v48
    %v162 = vand.u32 %v161, 8388607
    %v163 = vor.u32 %v162, 8388608
    %v164 = vsub.s32 0, %v163
    %v165 = vadd.s32 %v160, 1
    %vm166 = vcmp.gt.s32.totalorder %v165, 0
    %v167 = vsel %vm166, %v165, 0
    %v168 = vshrl.u32 %v167, 5
    %v169 = vand.u32 %v167, 31
    %v170 = vsub.s32 32, %v169
    %v171 = vshrl.u32 683565275, %v170
    %v172 = vshll.u32 683565275, %v169
    %v173 = vshrl.u32 2475754826, %v170
    %v174 = vor.u32 %v172, %v173
    %v175 = vshll.u32 2475754826, %v169
    %v176 = vshrl.u32 2131351028, %v170
    %v177 = vor.u32 %v175, %v176
    %v178 = vshll.u32 2131351028, %v169
    %v179 = vshrl.u32 2102212464, %v170
    %v180 = vor.u32 %v178, %v179
    %v181 = vshll.u32 2102212464, %v169
    %v182 = vshrl.u32 920167782, %v170
    %v183 = vor.u32 %v181, %v182
    %v184 = vshll.u32 920167782, %v169
    %v185 = vshrl.u32 1326507024, %v170
    %v186 = vor.u32 %v184, %v185
    %vm187 = vcmp.lt.s32.totalorder %v168, 1
    %vm188 = vcmp.lt.s32.totalorder %v168, 2
    %vm189 = vcmp.lt.s32.totalorder %v168, 3
    %vm190 = vcmp.lt.s32.totalorder %v168, 4
    %v191 = vsel %vm187, %v171, %v174
    %v192 = vsel %vm190, %v180, 2102212464
    %v193 = vsel %vm189, %v177, %v192
    %v194 = vsel %vm188, %v191, %v193
    %v195 = vsel %vm187, %v174, %v177
    %v196 = vsel %vm190, %v183, 920167782
    %v197 = vsel %vm189, %v180, %v196
    %v198 = vsel %vm188, %v195, %v197
    %v199 = vsel %vm187, %v177, %v180
    %v200 = vsel %vm190, %v186, 1326507024
    %v201 = vsel %vm189, %v183, %v200
    %v202 = vsel %vm188, %v199, %v201
    %v203 = vshll.u32 %v163, 8
    %v204 = vmul.u32.u64.compose %v203, %v202
    %v205 = vextract.low.u32 %v204
    %v206 = vextract.high.u32 %v204
    %v207 = vmul.u32.u64.compose %v203, %v198
    %v208 = vextract.low.u32 %v207
    %v209 = vextract.high.u32 %v207
    %v210 = vmul.u32 %v203, %v194
    %v211 = vadd.s32 %v206, %v208
    %vm212 = vc.u32 %v206, %v208
    %v213 = vadd.s32 %v209, 1
    %v214 = vsel %vm212, %v213, %v209
    %v215 = vadd.s32 %v210, %v214
    %v216 = vadd.s32 %v215, 536870912
    %v217 = vshrl.u32 %v216, 30
    %v218 = vshll.u32 %v217, 30
    %v219 = vsub.s32 %v215, %v218
    %vm220 = vcmp.lt.s32.totalorder %v219, 0
    %v221 = vsub.s32 0, %v219
    %v222 = vsel %vm220, %v221, %v219
    %v223 = vclz %v222
    %v224 = vsub.s32 %v223, 2
    %vm225 = vcmp.gt.s32.totalorder 0, %v224
    %v226 = vsel %vm225, 0, %v224
    %v227 = vsub.s32 32, %v226
    %v228 = vshll.u32 %v219, %v226
    %v229 = vshrl.u32 %v211, %v227
    %v230 = vor.u32 %v228, %v229
    %v231 = vsub.s32 4294967266, %v226
    %v232 = vadd.s32 %v231, 127
    %v233 = vshll.u32 %v232, 23
    %v234 = vor.u32 4788187, %v233
    %v235 = vand.u32 2147483647, %v234
    %v237 = vcvt.s32.f32 %v230
    %v238 = vmul.f32 %v237, %v235
    %v239 = vxor.u32 %v238, 2147483648
    %v240 = vsel %vm157, %v239, %v238
    %v241 = vsub.s32 4, %v217
    %v242 = vsel %vm157, %v241, %v217
    %v243 = vsel %vm156, %v48, %v240
    %v244 = vsel %vm156, 0, %v242
    %v245 = vcosq.f32.pop %v243
    %v246 = vsinq.f32.pop %v243
    %vm247 = vweird.f32 %v48
    %v248 = vand.u32 %v244, 3
    %vm249 = vcmp.lt.s32.totalorder %v248, 2
    %vm250 = vcmp.eq.s32.totalorder %v248, 0
    %v251 = vxor.u32 %v246, 2147483648
    %v252 = vsel %vm250, %v245, %v251
    %vm253 = vcmp.eq.s32.totalorder %v248, 2
    %v254 = vxor.u32 %v245, 2147483648
    %v255 = vsel %vm253, %v254, %v246
    %v256 = vsel %vm249, %v252, %v255
    %v257 = vsel %vm247, nan, %v256
    %v258 = vsel %vm50, 1, 0
    %v259 = vlaneseq
    %v260 = vshrl.u32 %v259, 7
    %v261 = vsub.s32 0, %v260
    %v262 = vrot.slane %v258, %v261
    %vm263 = vcmp.eq.s32.totalorder %v262, 1
    %v264 = vsel %vm263, %v154, %v257
    %265 = vst [vmem:[#allocation5] sm:$0xf] %v264
    // Predicated region
    $region18: #{tpu_custom_call.1} parent=1 // pred_check
      _
    $region19: #{tpu_custom_call.1} parent=1 // pred_check_branch
      %267 = sbr.rel (0) target = $region21
    $region20: #{tpu_custom_call.1} parent=1 // pred_region
      %s269 = ssub.s32 64, 64
      %270 = vsyncadd [#allocation4], %s269
      %s272 = sshll.u32 [#allocation5], 4
      %s273 = int_to_ptr.vmem [resolvable:$true] %s272
      %275 = dma.vmem_to_hbm [thread:$0]  %s273, 64, %s3, [#allocation4]
    $region21: #{tpu_custom_call.1} parent=1 // pred_fallthru
      _
    // Predicated region
    $region22: #{tpu_custom_call.1} parent=1 // pred_check
      _
    $region23: #{tpu_custom_call.1} parent=1 // pred_check_branch
      %277 = sbr.rel (0) target = $region25
    $region24: #{tpu_custom_call.1} parent=1 // pred_region
      %278 = dma.done [#allocation4], 64
    $region25: #{tpu_custom_call.1} parent=1 // pred_fallthru
      _
    %279 = vsyncpa [#allocation3], 1
    %280 = vsyncpa [#allocation4], 1

</llo_original>
